<compile_context>
chip_gen: v6e
topology: v6e:2x2x1
jax: 0.10.0
libtpu: 0.0.40
codegen_flags: <defaults>
</compile_context>

<pallas_src>
import jax
import jax.numpy as jnp
from jax.experimental import pallas as pl
from jax.experimental.pallas import tpu as pltpu


def _round_up(x, m):
    return ((x + m - 1) // m) * m


def generator_kernel(z_ref, w1_ref, b1_ref, w2_ref, b2_ref, w3_ref, b3_ref,
                     out_ref):
    compute_dtype = w1_ref.dtype  # bf16 or f32 (chosen by the wrapper)

    # Layer 1: Linear(z_dim, 64) + ReLU  (f32 accumulate, f32 epilogue)
    h1 = jnp.dot(z_ref[...], w1_ref[...],
                 preferred_element_type=jnp.float32) + b1_ref[...]
    h1 = jnp.maximum(h1, 0.0).astype(compute_dtype)

    # Layer 2: Linear(64, 128) + ReLU
    h2 = jnp.dot(h1, w2_ref[...],
                 preferred_element_type=jnp.float32) + b2_ref[...]
    h2 = jnp.maximum(h2, 0.0).astype(compute_dtype)

    # Layer 3: Linear(128, 121 padded to 128) -- lane-dense unmasked store.
    out_ref[...] = (jnp.dot(h2, w3_ref[...],
                            preferred_element_type=jnp.float32)
                    + b3_ref[...]).astype(out_ref.dtype)


def generator_forward(z, params, *, block_b=512, use_bf16=True):
    """z: (B, z_dim) float32. params: dict w1,b1,w2,b2,w3,b3 (weights as (in,out))."""
    B, z_dim = z.shape
    w1, b1 = params["w1"], params["b1"]   # (z_dim, 64), (1, 64)
    w2, b2 = params["w2"], params["b2"]   # (64, 128),  (1, 128)
    w3, b3 = params["w3"], params["b3"]   # (128, 121), (1, 121)
    out_dim = w3.shape[1]
    out_pad = _round_up(out_dim, 128)     # 128: lane-dense output stores

    # Zero-pad last layer to the padded output width (keeps numerics identical).
    w3p = jnp.pad(w3, ((0, 0), (0, out_pad - out_dim)))
    b3p = jnp.pad(b3, ((0, 0), (0, out_pad - out_dim)))

    compute_dtype = jnp.bfloat16 if use_bf16 else jnp.float32
    zc = z.astype(compute_dtype)
    w1c = w1.astype(compute_dtype)
    w2c = w2.astype(compute_dtype)
    w3c = w3p.astype(compute_dtype)
    # biases stay f32 (epilogue math in f32)

    # Batch tiling: TB multiple of 8 sublanes; pad B up to a multiple of TB.
    tb = min(_round_up(block_b, 8), _round_up(B, 8))
    b_padded = _round_up(B, tb)
    if b_padded != B:
        zc = jnp.pad(zc, ((0, b_padded - B), (0, 0)))
    grid = (b_padded // tb,)

    resident = lambda shape: pl.BlockSpec(shape, lambda i: (0, 0))

    out = pl.pallas_call(
        generator_kernel,
        out_shape=jax.ShapeDtypeStruct((b_padded, out_pad), jnp.float32),
        grid=grid,
        in_specs=[
            pl.BlockSpec((tb, z_dim), lambda i: (i, 0)),   # batch-tiled input
            resident(w1c.shape), resident(b1.shape),       # weights stay in VMEM
            resident(w2c.shape), resident(b2.shape),
            resident(w3c.shape), resident(b3p.shape),
        ],
        out_specs=pl.BlockSpec((tb, out_pad), lambda i: (i, 0)),
        compiler_params=pltpu.CompilerParams(
            dimension_semantics=("parallel",)),            # shard batch on v7x's 2 TCs
    )(zc, w1c, b1, w2c, b2, w3c, b3p)

    return out[:B, :out_dim]


def init_params(key, z_dim):
    """nn.Linear default init (uniform +-1/sqrt(fan_in)); weights stored as (in, out)."""
    dims = [(z_dim, 64), (64, 128), (128, 121)]
    params = {}
    keys = jax.random.split(key, 2 * len(dims))
    for i, (fan_in, fan_out) in enumerate(dims):
        bound = 1.0 / (fan_in ** 0.5)
        params[f"w{i + 1}"] = jax.random.uniform(
            keys[2 * i], (fan_in, fan_out), minval=-bound, maxval=bound,
            dtype=jnp.float32)
        params[f"b{i + 1}"] = jax.random.uniform(
            keys[2 * i + 1], (1, fan_out), minval=-bound, maxval=bound,
            dtype=jnp.float32)
    return params


def reference_forward(z, params, *, use_bf16=False):
    """Pure-JAX reference. With use_bf16=True it mirrors the kernel's cast pattern."""
    cdt = jnp.bfloat16 if use_bf16 else jnp.float32
    w1 = params["w1"].astype(cdt)
    w2 = params["w2"].astype(cdt)
    w3 = params["w3"].astype(cdt)
    h1 = jnp.dot(z.astype(cdt), w1,
                 preferred_element_type=jnp.float32) + params["b1"]
    h1 = jnp.maximum(h1, 0.0).astype(cdt)
    h2 = jnp.dot(h1, w2,
                 preferred_element_type=jnp.float32) + params["b2"]
    h2 = jnp.maximum(h2, 0.0).astype(cdt)
    return jnp.dot(h2, w3,
                   preferred_element_type=jnp.float32) + params["b3"]


if __name__ == "__main__":
    key = jax.random.PRNGKey(0)
    k_z, k_p = jax.random.split(key)

    B, Z_DIM = 32, 32
    z = jax.random.normal(k_z, (B, Z_DIM), dtype=jnp.float32)
    params = init_params(k_p, Z_DIM)

    # 1) Default path: bf16 matmul inputs, small batch tile to exercise the grid.
    out_bf16 = generator_forward(z, params, block_b=8, use_bf16=True)
    out_bf16 = jax.block_until_ready(out_bf16)
    ref_bf16 = reference_forward(z, params, use_bf16=True)
    assert out_bf16.shape == (B, 121), out_bf16.shape
    assert jnp.allclose(out_bf16, ref_bf16, atol=2e-2, rtol=2e-2), \
        "bf16 kernel mismatch vs bf16-matched reference"

    # 2) Full-precision path: single grid step, tight tolerance vs f32 reference.
    out_f32 = generator_forward(z, params, block_b=512, use_bf16=False)
    out_f32 = jax.block_until_ready(out_f32)
    ref_f32 = reference_forward(z, params, use_bf16=False)
    assert out_f32.shape == (B, 121), out_f32.shape
    assert jnp.allclose(out_f32, ref_f32, atol=1e-5, rtol=1e-5), \
        "f32 kernel mismatch vs f32 reference"

    print("KERNEL_OK")
</pallas_src>

<mosaic_0001>
module attributes {stable_mosaic.version = 11 : i64} {
  func.func @generator_kernel(%arg0: i32, %arg1: memref<8x32xbf16, #tpu.memory_space<vmem>>, %arg2: memref<32x64xbf16, #tpu.memory_space<vmem>>, %arg3: memref<1x64xf32, #tpu.memory_space<vmem>>, %arg4: memref<64x128xbf16, #tpu.memory_space<vmem>>, %arg5: memref<1x128xf32, #tpu.memory_space<vmem>>, %arg6: memref<128x128xbf16, #tpu.memory_space<vmem>>, %arg7: memref<1x128xf32, #tpu.memory_space<vmem>>, %arg8: memref<8x128xf32, #tpu.memory_space<vmem>>) attributes {dimension_semantics = [#tpu.dimension_semantics<parallel>], iteration_bounds = array<i64: 4>, scalar_prefetch = 0 : i64, scratch_operands = 0 : i64, tpu.core_type = #tpu.core_type<tc>, window_params = [{transform_indices = @transform_0, window_bounds = array<i64: 8, 32>}, {pipeline_mode = #tpu.pipeline_mode<synchronous>, transform_indices = @transform_1, window_bounds = array<i64: 32, 64>}, {pipeline_mode = #tpu.pipeline_mode<synchronous>, transform_indices = @transform_2, window_bounds = array<i64: 1, 64>}, {pipeline_mode = #tpu.pipeline_mode<synchronous>, transform_indices = @transform_3, window_bounds = array<i64: 64, 128>}, {pipeline_mode = #tpu.pipeline_mode<synchronous>, transform_indices = @transform_4, window_bounds = array<i64: 1, 128>}, {pipeline_mode = #tpu.pipeline_mode<synchronous>, transform_indices = @transform_5, window_bounds = array<i64: 128, 128>}, {pipeline_mode = #tpu.pipeline_mode<synchronous>, transform_indices = @transform_6, window_bounds = array<i64: 1, 128>}, {transform_indices = @transform_7, window_bounds = array<i64: 8, 128>}]} {
    %c0 = arith.constant 0 : index
    %c0_0 = arith.constant 0 : index
    %0 = vector.load %arg1[%c0, %c0_0] : memref<8x32xbf16, #tpu.memory_space<vmem>>, vector<8x32xbf16>
    %c0_1 = arith.constant 0 : index
    %c0_2 = arith.constant 0 : index
    %1 = vector.load %arg2[%c0_1, %c0_2] : memref<32x64xbf16, #tpu.memory_space<vmem>>, vector<32x64xbf16>
    %cst = arith.constant dense<0.000000e+00> : vector<8x64xf32>
    %2 = tpu.matmul %0, %1, %cst {dimension_numbers = #tpu.dot_dimension_numbers<[1], [0], [0], [1], [0, 0, 1, 1], [], []>} : vector<8x32xbf16>, vector<32x64xbf16>, vector<8x64xf32> -> vector<8x64xf32>
    %c0_3 = arith.constant 0 : index
    %c0_4 = arith.constant 0 : index
    %3 = vector.load %arg3[%c0_3, %c0_4] : memref<1x64xf32, #tpu.memory_space<vmem>>, vector<1x64xf32>
    %4 = vector.broadcast %3 : vector<1x64xf32> to vector<8x64xf32>
    %5 = arith.addf %2, %4 : vector<8x64xf32>
    %cst_5 = arith.constant 0.000000e+00 : f32
    %6 = vector.broadcast %cst_5 : f32 to vector<8x64xf32>
    %7 = arith.maximumf %5, %6 : vector<8x64xf32>
    %8 = arith.truncf %7 : vector<8x64xf32> to vector<8x64xbf16>
    %c0_6 = arith.constant 0 : index
    %c0_7 = arith.constant 0 : index
    %9 = vector.load %arg4[%c0_6, %c0_7] : memref<64x128xbf16, #tpu.memory_space<vmem>>, vector<64x128xbf16>
    %cst_8 = arith.constant dense<0.000000e+00> : vector<8x128xf32>
    %10 = tpu.matmul %8, %9, %cst_8 {dimension_numbers = #tpu.dot_dimension_numbers<[1], [0], [0], [1], [0, 0, 1, 1], [], []>} : vector<8x64xbf16>, vector<64x128xbf16>, vector<8x128xf32> -> vector<8x128xf32>
    %c0_9 = arith.constant 0 : index
    %c0_10 = arith.constant 0 : index
    %11 = vector.load %arg5[%c0_9, %c0_10] : memref<1x128xf32, #tpu.memory_space<vmem>>, vector<1x128xf32>
    %12 = vector.broadcast %11 : vector<1x128xf32> to vector<8x128xf32>
    %13 = arith.addf %10, %12 : vector<8x128xf32>
    %cst_11 = arith.constant 0.000000e+00 : f32
    %14 = vector.broadcast %cst_11 : f32 to vector<8x128xf32>
    %15 = arith.maximumf %13, %14 : vector<8x128xf32>
    %16 = arith.truncf %15 : vector<8x128xf32> to vector<8x128xbf16>
    %c0_12 = arith.constant 0 : index
    %c0_13 = arith.constant 0 : index
    %17 = vector.load %arg6[%c0_12, %c0_13] : memref<128x128xbf16, #tpu.memory_space<vmem>>, vector<128x128xbf16>
    %cst_14 = arith.constant dense<0.000000e+00> : vector<8x128xf32>
    %18 = tpu.matmul %16, %17, %cst_14 {dimension_numbers = #tpu.dot_dimension_numbers<[1], [0], [0], [1], [0, 0, 1, 1], [], []>} : vector<8x128xbf16>, vector<128x128xbf16>, vector<8x128xf32> -> vector<8x128xf32>
    %c0_15 = arith.constant 0 : index
    %c0_16 = arith.constant 0 : index
    %19 = vector.load %arg7[%c0_15, %c0_16] : memref<1x128xf32, #tpu.memory_space<vmem>>, vector<1x128xf32>
    %20 = vector.broadcast %19 : vector<1x128xf32> to vector<8x128xf32>
    %21 = arith.addf %18, %20 : vector<8x128xf32>
    %c0_17 = arith.constant 0 : index
    %c0_18 = arith.constant 0 : index
    %22 = vector.load %arg8[%c0_17, %c0_18] : memref<8x128xf32, #tpu.memory_space<vmem>>, vector<8x128xf32>
    tpu.vector_store %arg8[%c0_17, %c0_18], %21 {strides = array<i32>} : memref<8x128xf32, #tpu.memory_space<vmem>>, vector<8x128xf32>,
    return
  }
  func.func @transform_0(%arg0: i32) -> (i32, i32) {
    %c0_i32 = arith.constant 0 : i32
    %c0_i32_0 = arith.constant 0 : i32
    return %arg0, %c0_i32 : i32, i32
  }
  func.func @transform_1(%arg0: i32) -> (i32, i32) {
    %c0_i32 = arith.constant 0 : i32
    %c0_i32_0 = arith.constant 0 : i32
    %c0_i32_1 = arith.constant 0 : i32
    return %c0_i32, %c0_i32_0 : i32, i32
  }
  func.func @transform_2(%arg0: i32) -> (i32, i32) {
    %c0_i32 = arith.constant 0 : i32
    %c0_i32_0 = arith.constant 0 : i32
    %c0_i32_1 = arith.constant 0 : i32
    return %c0_i32, %c0_i32_0 : i32, i32
  }
  func.func @transform_3(%arg0: i32) -> (i32, i32) {
    %c0_i32 = arith.constant 0 : i32
    %c0_i32_0 = arith.constant 0 : i32
    %c0_i32_1 = arith.constant 0 : i32
    return %c0_i32, %c0_i32_0 : i32, i32
  }
  func.func @transform_4(%arg0: i32) -> (i32, i32) {
    %c0_i32 = arith.constant 0 : i32
    %c0_i32_0 = arith.constant 0 : i32
    %c0_i32_1 = arith.constant 0 : i32
    return %c0_i32, %c0_i32_0 : i32, i32
  }
  func.func @transform_5(%arg0: i32) -> (i32, i32) {
    %c0_i32 = arith.constant 0 : i32
    %c0_i32_0 = arith.constant 0 : i32
    %c0_i32_1 = arith.constant 0 : i32
    return %c0_i32, %c0_i32_0 : i32, i32
  }
  func.func @transform_6(%arg0: i32) -> (i32, i32) {
    %c0_i32 = arith.constant 0 : i32
    %c0_i32_0 = arith.constant 0 : i32
    %c0_i32_1 = arith.constant 0 : i32
    return %c0_i32, %c0_i32_0 : i32, i32
  }
  func.func @transform_7(%arg0: i32) -> (i32, i32) {
    %c0_i32 = arith.constant 0 : i32
    %c0_i32_0 = arith.constant 0 : i32
    return %arg0, %c0_i32 : i32, i32
  }
}

</mosaic_0001>

<llo_original>
// kernel: tpu_custom_call.1
$region0: #{tpu_custom_call.1}
  #allocation0 [shape = 'u32[]', space=smem, size = 0x4, offset = 0x4, fixed_abs, tag = 'smem constant byte address 0x4 - core index']
  #allocation1 [shape = 'u32[144,128]{1,0:T(1,128)}', space=vmem, size = 0x12000, scoped, tag = 'internal scratch']
  %s0 = inlined_call_operand.hbm [shape: bf16[32,32], index: 0, kind: input, shape index: {}]
  %s1 = inlined_call_operand.hbm [shape: bf16[32,64], index: 1, kind: input, shape index: {}]
  %s2 = inlined_call_operand.vmem [shape: f32[1,64], index: 2, kind: input, shape index: {}]
  %s3 = inlined_call_operand.hbm [shape: bf16[64,128], index: 3, kind: input, shape index: {}]
  %s4 = inlined_call_operand.vmem [shape: f32[1,128], index: 4, kind: input, shape index: {}]
  %s5 = inlined_call_operand.hbm [shape: bf16[128,128], index: 5, kind: input, shape index: {}]
  %s6 = inlined_call_operand.vmem [shape: f32[1,128], index: 6, kind: input, shape index: {}]
  %s7 = inlined_call_operand.hbm [shape: f32[32,128], index: 7, kind: output, shape index: {}]
  %s8 = sld [smem:[#allocation0]]
  $region77: #{tpu_custom_call.1} parent=0
    _
  %s10 = ssub.s32 1, %s8
  %s11 = scalar_select 0, %s10, %s8
  $region1: #{tpu_custom_call.1} parent=0
    #allocation2 [shape = 'u8[4096]{0}', space=vmem, size = 0x1000, scoped, tag = 'input window, operand 0']
    #allocation3 [shape = 's32[2]{0}', space=sflag, size = 0x8, scoped, tag = 'scoped memory for tpu_custom_call.1']
    #allocation4 [shape = 's32[2]{0}', space=sflag, size = 0x8, scoped, tag = 'scoped memory for tpu_custom_call.1']
    #allocation5 [shape = 'u8[8192]{0}', space=vmem, size = 0x2000, scoped, tag = 'input window, operand 1, single buffered']
    #allocation6 [shape = 's32[1]{0}', space=sflag, size = 0x4, scoped, tag = 'scoped memory for tpu_custom_call.1']
    #allocation7 [shape = 'u8[16384]{0}', space=vmem, size = 0x4000, scoped, tag = 'input window, operand 3, single buffered']
    #allocation8 [shape = 'u8[32768]{0}', space=vmem, size = 0x8000, scoped, tag = 'input window, operand 5, single buffered']
    #allocation9 [shape = 's32[1]{0}', space=sflag, size = 0x4, scoped, tag = 'scoped memory for tpu_custom_call.1']
    #allocation10 [shape = 'u8[8192]{0}', space=vmem, size = 0x2000, scoped, tag = 'output window, operand 0']
    %12 = vsyncpa [#allocation3], 0
    %s13 = scalar_lea.sflag [#allocation3], 1
    %14 = vsyncpa %s13, 0
    %15 = vsyncpa [#allocation6], 0
    %16 = vsyncpa [#allocation9], 0
    %17 = vsyncpa [#allocation4], 0
    %s18 = scalar_lea.sflag [#allocation4], 1
    %19 = vsyncpa %s18, 0
    loop: start=0, step=1, limit=6
    $region2: #{tpu_custom_call.1} parent=1 // loop_pre_header
      _
    $region3: #{tpu_custom_call.1} parent=1 // loop_header
      %s21 = sphi 0, %s25
      %p22 = scmp.ge.s32.totalorder %s21, 6
      %s31 = sphi 0, %s33
      %s34 = sphi 0, %s31
      %s35 = sphi 0, %s34
      %s51 = sphi 0, %s35
      %s55 = sphi 0, %s55
      %s57 = sphi 0, %s55
      %s58 = sphi 0, %s57
      %s72 = sphi 0, %s58
      %s76 = sphi 0, %s76
      %s78 = sphi 0, %s76
      %s79 = sphi 0, %s78
      %s93 = sphi 0, %s79
      %s97 = sphi 0, %s97
      %s99 = sphi 0, %s97
      %s100 = sphi 0, %s99
      %s114 = sphi 0, %s100
      %s118 = sphi 0, %s118
      %s120 = sphi 0, %s118
      %s121 = sphi 0, %s120
      %s135 = sphi 0, %s121
      %s139 = sphi 0, %s139
      %s141 = sphi 0, %s139
      %s142 = sphi 0, %s141
      %s156 = sphi 0, %s142
      %s160 = sphi 0, %s160
      %s162 = sphi 0, %s160
      %s163 = sphi 0, %s162
      %s177 = sphi 0, %s163
      %s183 = sphi 0, %s185
      %s186 = sphi 0, %s183
      %s187 = sphi 0, %s186
      %s203 = sphi 0, %s187
    $region4: #{tpu_custom_call.1} parent=1 // loop_header_branch
      %24 = sbr.rel (%p22) target = $region8
    $region5: #{tpu_custom_call.1} parent=1 // loop_body
      %s26 = ssub.s32 %s21, 1
      %s27 = ssub.s32 %s21, 2
      %s28 = sadd.s32 %s21, 1
      %s29 = ssub.s32 %s21, %s28
      %p30 = scmp.eq.s32.totalorder %s29, 0
      %s32 = sadd.s32 %s31, 1
      %s33 = scalar_select %p30, %s31, %s32
      %p36 = pneg %p30
      %p37 = scmp.eq.s32.totalorder %s21, 3
      %p38 = por %p36, %p37
      %p39 = scmp.ne.s32.totalorder %s31, %s34
      %p40 = scmp.eq.s32.totalorder %s21, 0
      %p41 = por %p39, %p40
      %p42 = scmp.ne.s32.totalorder %s31, %s34
      %p43 = scmp.eq.s32.totalorder %s26, 3
      %p44 = por %p42, %p43
      %p45 = scmp.ne.s32.totalorder %s34, %s35
      %p46 = scmp.eq.s32.totalorder %s26, 0
      %p47 = por %p45, %p46
      %p48 = scmp.ne.s32.totalorder %s34, %s35
      %p49 = scmp.eq.s32.totalorder %s27, 3
      %p50 = por %p48, %p49
      %p52 = scmp.ne.s32.totalorder %s35, %s51
      %p53 = scmp.eq.s32.totalorder %s27, 0
      %p54 = por %p52, %p53
      %s56 = sadd.s32 %s55, 1
      %p59 = scmp.eq.s32.totalorder %s21, 3
      %p60 = scmp.ne.s32.totalorder %s55, %s57
      %p61 = scmp.eq.s32.totalorder %s21, 0
      %p62 = por %p60, %p61
      %p63 = scmp.ne.s32.totalorder %s55, %s57
      %p64 = scmp.eq.s32.totalorder %s26, 3
      %p65 = por %p63, %p64
      %p66 = scmp.ne.s32.totalorder %s57, %s58
      %p67 = scmp.eq.s32.totalorder %s26, 0
      %p68 = por %p66, %p67
      %p69 = scmp.ne.s32.totalorder %s57, %s58
      %p70 = scmp.eq.s32.totalorder %s27, 3
      %p71 = por %p69, %p70
      %p73 = scmp.ne.s32.totalorder %s58, %s72
      %p74 = scmp.eq.s32.totalorder %s27, 0
      %p75 = por %p73, %p74
      %s77 = sadd.s32 %s76, 1
      %p80 = scmp.eq.s32.totalorder %s21, 3
      %p81 = scmp.ne.s32.totalorder %s76, %s78
      %p82 = scmp.eq.s32.totalorder %s21, 0
      %p83 = por %p81, %p82
      %p84 = scmp.ne.s32.totalorder %s76, %s78
      %p85 = scmp.eq.s32.totalorder %s26, 3
      %p86 = por %p84, %p85
      %p87 = scmp.ne.s32.totalorder %s78, %s79
      %p88 = scmp.eq.s32.totalorder %s26, 0
      %p89 = por %p87, %p88
      %p90 = scmp.ne.s32.totalorder %s78, %s79
      %p91 = scmp.eq.s32.totalorder %s27, 3
      %p92 = por %p90, %p91
      %p94 = scmp.ne.s32.totalorder %s79, %s93
      %p95 = scmp.eq.s32.totalorder %s27, 0
      %p96 = por %p94, %p95
      %s98 = sadd.s32 %s97, 1
      %p101 = scmp.eq.s32.totalorder %s21, 3
      %p102 = scmp.ne.s32.totalorder %s97, %s99
      %p103 = scmp.eq.s32.totalorder %s21, 0
      %p104 = por %p102, %p103
      %p105 = scmp.ne.s32.totalorder %s97, %s99
      %p106 = scmp.eq.s32.totalorder %s26, 3
      %p107 = por %p105, %p106
      %p108 = scmp.ne.s32.totalorder %s99, %s100
      %p109 = scmp.eq.s32.totalorder %s26, 0
      %p110 = por %p108, %p109
      %p111 = scmp.ne.s32.totalorder %s99, %s100
      %p112 = scmp.eq.s32.totalorder %s27, 3
      %p113 = por %p111, %p112
      %p115 = scmp.ne.s32.totalorder %s100, %s114
      %p116 = scmp.eq.s32.totalorder %s27, 0
      %p117 = por %p115, %p116
      %s119 = sadd.s32 %s118, 1
      %p122 = scmp.eq.s32.totalorder %s21, 3
      %p123 = scmp.ne.s32.totalorder %s118, %s120
      %p124 = scmp.eq.s32.totalorder %s21, 0
      %p125 = por %p123, %p124
      %p126 = scmp.ne.s32.totalorder %s118, %s120
      %p127 = scmp.eq.s32.totalorder %s26, 3
      %p128 = por %p126, %p127
      %p129 = scmp.ne.s32.totalorder %s120, %s121
      %p130 = scmp.eq.s32.totalorder %s26, 0
      %p131 = por %p129, %p130
      %p132 = scmp.ne.s32.totalorder %s120, %s121
      %p133 = scmp.eq.s32.totalorder %s27, 3
      %p134 = por %p132, %p133
      %p136 = scmp.ne.s32.totalorder %s121, %s135
      %p137 = scmp.eq.s32.totalorder %s27, 0
      %p138 = por %p136, %p137
      %s140 = sadd.s32 %s139, 1
      %p143 = scmp.eq.s32.totalorder %s21, 3
      %p144 = scmp.ne.s32.totalorder %s139, %s141
      %p145 = scmp.eq.s32.totalorder %s21, 0
      %p146 = por %p144, %p145
      %p147 = scmp.ne.s32.totalorder %s139, %s141
      %p148 = scmp.eq.s32.totalorder %s26, 3
      %p149 = por %p147, %p148
      %p150 = scmp.ne.s32.totalorder %s141, %s142
      %p151 = scmp.eq.s32.totalorder %s26, 0
      %p152 = por %p150, %p151
      %p153 = scmp.ne.s32.totalorder %s141, %s142
      %p154 = scmp.eq.s32.totalorder %s27, 3
      %p155 = por %p153, %p154
      %p157 = scmp.ne.s32.totalorder %s142, %s156
      %p158 = scmp.eq.s32.totalorder %s27, 0
      %p159 = por %p157, %p158
      %s161 = sadd.s32 %s160, 1
      %p164 = scmp.eq.s32.totalorder %s21, 3
      %p165 = scmp.ne.s32.totalorder %s160, %s162
      %p166 = scmp.eq.s32.totalorder %s21, 0
      %p167 = por %p165, %p166
      %p168 = scmp.ne.s32.totalorder %s160, %s162
      %p169 = scmp.eq.s32.totalorder %s26, 3
      %p170 = por %p168, %p169
      %p171 = scmp.ne.s32.totalorder %s162, %s163
      %p172 = scmp.eq.s32.totalorder %s26, 0
      %p173 = por %p171, %p172
      %p174 = scmp.ne.s32.totalorder %s162, %s163
      %p175 = scmp.eq.s32.totalorder %s27, 3
      %p176 = por %p174, %p175
      %p178 = scmp.ne.s32.totalorder %s163, %s177
      %p179 = scmp.eq.s32.totalorder %s27, 0
      %p180 = por %p178, %p179
      %s181 = ssub.s32 %s21, %s28
      %p182 = scmp.eq.s32.totalorder %s181, 0
      %s184 = sadd.s32 %s183, 1
      %s185 = scalar_select %p182, %s183, %s184
      %p188 = pneg %p182
      %p189 = scmp.eq.s32.totalorder %s21, 3
      %p190 = por %p188, %p189
      %p191 = scmp.ne.s32.totalorder %s183, %s186
      %p192 = scmp.eq.s32.totalorder %s21, 0
      %p193 = por %p191, %p192
      %p194 = scmp.ne.s32.totalorder %s183, %s186
      %p195 = scmp.eq.s32.totalorder %s26, 3
      %p196 = por %p194, %p195
      %p197 = scmp.ne.s32.totalorder %s186, %s187
      %p198 = scmp.eq.s32.totalorder %s26, 0
      %p199 = por %p197, %p198
      %p200 = scmp.ne.s32.totalorder %s186, %s187
      %p201 = scmp.eq.s32.totalorder %s27, 3
      %p202 = por %p200, %p201
      %p204 = scmp.ne.s32.totalorder %s187, %s203
      %p205 = scmp.eq.s32.totalorder %s27, 0
      %p206 = por %p204, %p205
      %p207 = scmp.le.s32.totalorder 1, %s21
      %p208 = scmp.lt.s32.totalorder %s21, 5
      %p209 = pnand %p207, %p208
      %p210 = pneg %p209
      // Predicated region
      $region9: #{tpu_custom_call.1} parent=5 // pred_check
        _
      $region10: #{tpu_custom_call.1} parent=5 // pred_check_branch
        %212 = sbr.rel (%p209) target = $region12
      $region11: #{tpu_custom_call.1} parent=5 // pred_region
        %s213 = ssub.s32 %s21, 1
        // Predicated region
        $region13: #{tpu_custom_call.1} parent=11 // pred_check
          %p214 = pneg %p68
        $region14: #{tpu_custom_call.1} parent=11 // pred_check_branch
          %216 = sbr.rel (%p214) target = $region16
        $region15: #{tpu_custom_call.1} parent=11 // pred_region
          %s218 = ssub.s32 256, 256
          %219 = vsyncadd [#allocation6], %s218
          %s220 = sshll.u32 [#allocation5], 4
          %s221 = int_to_ptr.vmem [resolvable:$true] %s220
          %226 = dma.hbm_to_vmem [thread:$0]  %s1, 256, %s221, [#allocation6], 64, 64, 4
        $region16: #{tpu_custom_call.1} parent=11 // pred_fallthru
          _
        // Predicated region
        $region17: #{tpu_custom_call.1} parent=11 // pred_check
          %p227 = pneg %p89
        $region18: #{tpu_custom_call.1} parent=11 // pred_check_branch
          %229 = sbr.rel (%p227) target = $region20
        $region19: #{tpu_custom_call.1} parent=11 // pred_region
          _
        $region20: #{tpu_custom_call.1} parent=11 // pred_fallthru
          _
        // Predicated region
        $region21: #{tpu_custom_call.1} parent=11 // pred_check
          %p230 = pneg %p110
        $region22: #{tpu_custom_call.1} parent=11 // pred_check_branch
          %232 = sbr.rel (%p230) target = $region24
        $region23: #{tpu_custom_call.1} parent=11 // pred_region
          %s234 = ssub.s32 512, 512
          %235 = vsyncadd [#allocation6], %s234
          %s236 = sshll.u32 [#allocation7], 4
          %s237 = int_to_ptr.vmem [resolvable:$true] %s236
          %242 = dma.hbm_to_vmem [thread:$0]  %s3, 512, %s237, [#allocation6], 64, 64, 4
        $region24: #{tpu_custom_call.1} parent=11 // pred_fallthru
          _
        // Predicated region
        $region25: #{tpu_custom_call.1} parent=11 // pred_check
          %p243 = pneg %p131
        $region26: #{tpu_custom_call.1} parent=11 // pred_check_branch
          %245 = sbr.rel (%p243) target = $region28
        $region27: #{tpu_custom_call.1} parent=11 // pred_region
          _
        $region28: #{tpu_custom_call.1} parent=11 // pred_fallthru
          _
        // Predicated region
        $region29: #{tpu_custom_call.1} parent=11 // pred_check
          %p246 = pneg %p152
        $region30: #{tpu_custom_call.1} parent=11 // pred_check_branch
          %248 = sbr.rel (%p246) target = $region32
        $region31: #{tpu_custom_call.1} parent=11 // pred_region
          %s250 = ssub.s32 1024, 1024
          %251 = vsyncadd [#allocation9], %s250
          %s252 = sshll.u32 [#allocation8], 4
          %s253 = int_to_ptr.vmem [resolvable:$true] %s252
          %258 = dma.hbm_to_vmem [thread:$0]  %s5, 1024, %s253, [#allocation9], 64, 64, 4
        $region32: #{tpu_custom_call.1} parent=11 // pred_fallthru
          _
        // Predicated region
        $region33: #{tpu_custom_call.1} parent=11 // pred_check
          %p259 = pneg %p173
        $region34: #{tpu_custom_call.1} parent=11 // pred_check_branch
          %261 = sbr.rel (%p259) target = $region36
        $region35: #{tpu_custom_call.1} parent=11 // pred_region
          _
        $region36: #{tpu_custom_call.1} parent=11 // pred_fallthru
          _
      $region12: #{tpu_custom_call.1} parent=5 // pred_fallthru
        _
      %p262 = scmp.lt.s32.totalorder %s21, 4
      // Predicated region
      $region37: #{tpu_custom_call.1} parent=5 // pred_check
        %p263 = pneg %p262
      $region38: #{tpu_custom_call.1} parent=5 // pred_check_branch
        %265 = sbr.rel (%p263) target = $region40
      $region39: #{tpu_custom_call.1} parent=5 // pred_region
        // Predicated region
        $region41: #{tpu_custom_call.1} parent=39 // pred_check
          %p266 = pneg %p41
        $region42: #{tpu_custom_call.1} parent=39 // pred_check_branch
          %268 = sbr.rel (%p266) target = $region44
        $region43: #{tpu_custom_call.1} parent=39 // pred_region
          %s269 = sand.u32 %s31, 1
          %s270 = scalar_lea.sflag [#allocation3], %s269
          %s271 = sand.u32 %s31, 1
          %s272 = smul.addr %s271, 4
          %s273 = scalar_lea.vmem [#allocation2], %s272
          %s275 = ssub.s32 64, 64
          %276 = vsyncadd %s270, %s275
          %s277 = smul.addr %s21, 64
          %s278 = scalar_lea.hbm %s0, %s277
          %s280 = sshll.u32 %s273, 4
          %s281 = int_to_ptr.vmem [resolvable:$true] %s280
          %283 = dma.hbm_to_vmem [thread:$0]  %s278, 64, %s281, %s270
        $region44: #{tpu_custom_call.1} parent=39 // pred_fallthru
          _
      $region40: #{tpu_custom_call.1} parent=5 // pred_fallthru
        _
      %p284 = scmp.le.s32.totalorder 1, %s21
      %p285 = scmp.lt.s32.totalorder %s21, 5
      %p286 = pnand %p284, %p285
      %p287 = pneg %p286
      // Predicated region
      $region45: #{tpu_custom_call.1} parent=5 // pred_check
        _
      $region46: #{tpu_custom_call.1} parent=5 // pred_check_branch
        %289 = sbr.rel (%p286) target = $region48
      $region47: #{tpu_custom_call.1} parent=5 // pred_region
        %s290 = ssub.s32 %s21, 1
        %s291 = sand.u32 %s34, 1
        %s292 = scalar_lea.sflag [#allocation3], %s291
        %s293 = sand.u32 %s34, 1
        %s294 = smul.addr %s293, 4
        %s295 = scalar_lea.vmem [#allocation2], %s294
        // Predicated region
        $region49: #{tpu_custom_call.1} parent=47 // pred_check
          %p296 = pneg %p47
        $region50: #{tpu_custom_call.1} parent=47 // pred_check_branch
          %298 = sbr.rel (%p296) target = $region52
        $region51: #{tpu_custom_call.1} parent=47 // pred_region
          %299 = dma.done %s292, 64
        $region52: #{tpu_custom_call.1} parent=47 // pred_fallthru
          _
        // Predicated region
        $region53: #{tpu_custom_call.1} parent=47 // pred_check
          %p300 = pneg %p68
        $region54: #{tpu_custom_call.1} parent=47 // pred_check_branch
          %302 = sbr.rel (%p300) target = $region56
        $region55: #{tpu_custom_call.1} parent=47 // pred_region
          %303 = dma.done [#allocation6], 256
        $region56: #{tpu_custom_call.1} parent=47 // pred_fallthru
          _
        // Predicated region
        $region57: #{tpu_custom_call.1} parent=47 // pred_check
          %p304 = pneg %p110
        $region58: #{tpu_custom_call.1} parent=47 // pred_check_branch
          %306 = sbr.rel (%p304) target = $region60
        $region59: #{tpu_custom_call.1} parent=47 // pred_region
          %307 = dma.done [#allocation6], 512
        $region60: #{tpu_custom_call.1} parent=47 // pred_fallthru
          _
        // Predicated region
        $region61: #{tpu_custom_call.1} parent=47 // pred_check
          %p308 = pneg %p152
        $region62: #{tpu_custom_call.1} parent=47 // pred_check_branch
          %310 = sbr.rel (%p308) target = $region64
        $region63: #{tpu_custom_call.1} parent=47 // pred_region
          %311 = dma.done [#allocation9], 1024
        $region64: #{tpu_custom_call.1} parent=47 // pred_fallthru
          _
        %s312 = sand.u32 %s34, 1
        %s313 = scalar_lea.sflag [#allocation3], %s312
        %s314 = sand.u32 %s34, 1
        %s315 = smul.addr %s314, 4
        %s316 = scalar_lea.vmem [#allocation2], %s315
        %p317 = pneg %p47
        %p318 = pneg %p44
        %p319 = pneg %p68
        %p320 = pneg %p65
        %p321 = pneg %p89
        %p322 = pneg %p86
        %p323 = pneg %p110
        %p324 = pneg %p107
        %p325 = pneg %p131
        %p326 = pneg %p128
        %p327 = pneg %p152
        %p328 = pneg %p149
        %p329 = pneg %p173
        %p330 = pneg %p170
        %p331 = pneg %p199
        %p332 = pneg %p196
        %s333 = sand.u32 %s186, 1
        %s334 = scalar_lea.sflag [#allocation4], %s333
        %s335 = sand.u32 %s186, 1
        %s336 = smul.addr %s335, 8
        %s337 = scalar_lea.vmem [#allocation10], %s336
        %v339 = vld [vmem:[%s295] sm:$0xf]
        %v340 = vld [vmem:[#allocation5] sm:$0xf]
        %v341 = vld [vmem:[#allocation5 + $0x4] sm:$0xf]
        %v342 = vld [vmem:[#allocation5 + $0x8] sm:$0xf]
        %v343 = vld [vmem:[#allocation5 + $0xc] sm:$0xf]
        %v344 = vld [vmem:[%s2] sm:$0x1]
        %v346 = vlaneseq
        %v347 = vshrl.u32 %v346, 7
        %v348 = vsub.s32 0, %v347
        %v349 = vrot.slane %v344, %v348
        %v355 = vunpack.c.l.b16 %v340
        %v356 = vunpack.c.l.b16 %v341
        %v357 = vunpack.c.l.b16 %v342
        %v358 = vunpack.c.l.b16 %v343
        %v359 = vpack.c.b16 %v356, %v355
        %v360 = vpack.c.b16 %v358, %v357
        %vm363 = vcmask 261120
        %v365 = vsel %vm363, %v339, 0
        %367 = vmatprep.subr.bf16.mxu0 0
        %368 = vmatpush1.bf16.msra.mxu0 0
        %369 = vmatprep.subr.bf16.mxu0 0
        %370 = vmatpush1.bf16.msra.mxu0 0
        %371 = vmatprep.subr.bf16.mxu0 0
        %372 = vmatpush1.bf16.msra.mxu0 0
        %373 = vmatprep.subr.bf16.mxu0 0
        %374 = vmatpush1.bf16.msra.mxu0 0
        %375 = vmatprep.subr.bf16.mxu0 0
        %376 = vmatpush1.bf16.msra.mxu0 0
        %377 = vmatprep.subr.bf16.mxu0 0
        %378 = vmatpush1.bf16.msra.mxu0 0
        %379 = vmatprep.subr.bf16.mxu0 0
        %380 = vmatpush1.bf16.msra.mxu0 %v360
        %381 = vmatprep.subr.bf16.mxu0 0
        %382 = vmatpush1.bf16.msra.mxu0 %v359
        %383 = vmatprep.subr.bf16.mxu0 0
        %384 = vmatpush2.bf16.msra.mxu0 0
        %385 = vmatprep.subr.bf16.mxu0 0
        %386 = vmatpush2.bf16.msra.mxu0 0
        %387 = vmatprep.subr.bf16.mxu0 0
        %388 = vmatpush2.bf16.msra.mxu0 0
        %389 = vmatprep.subr.bf16.mxu0 0
        %390 = vmatpush2.bf16.msra.mxu0 0
        %391 = vmatprep.subr.bf16.mxu0 0
        %392 = vmatpush2.bf16.msra.mxu0 0
        %393 = vmatprep.subr.bf16.mxu0 0
        %394 = vmatpush2.bf16.msra.mxu0 0
        %395 = vmatprep.subr.bf16.mxu0 0
        %396 = vmatpush2.bf16.msra.mxu0 0
        %397 = vmatprep.subr.bf16.mxu0 0
        %398 = vmatpush2.bf16.msra.mxu0 0
        %399 = vmatprep.mubr.bf16.mxu0 0
        %400 = vmatmul.mubr.bf16.gmra.mxu0 %v365
        %v401 = vpop.f32.mrf.mxu0
        %v402 = vadd.f32 %v349, %v401
        %v403 = vpop.f32.mrf.mxu0
        %v404 = vpop.f32.mrf.mxu0
        %v405 = vpop.f32.mrf.mxu0
        %406 = vdwg.mxu0
        %v407 = vmax.f32 %v402, 0.0
        %v408 = vpack.c.bf16 %v407, %v407
        %v409 = vld [vmem:[#allocation7] sm:$0xf]
        %v410 = vld [vmem:[#allocation7 + $0x4] sm:$0xf]
        %v411 = vld [vmem:[#allocation7 + $0x8] sm:$0xf]
        %v412 = vld [vmem:[#allocation7 + $0xc] sm:$0xf]
        %v413 = vld [vmem:[#allocation7 + $0x10] sm:$0xf]
        %v414 = vld [vmem:[#allocation7 + $0x14] sm:$0xf]
        %v415 = vld [vmem:[#allocation7 + $0x18] sm:$0xf]
        %v416 = vld [vmem:[#allocation7 + $0x1c] sm:$0xf]
        %v417 = vld [vmem:[%s4] sm:$0x1]
        %v419 = vlaneseq
        %v420 = vshrl.u32 %v419, 7
        %v421 = vsub.s32 0, %v420
        %v422 = vrot.slane %v417, %v421
        %v432 = vunpack.c.l.b16 %v409
        %v433 = vunpack.c.l.b16 %v410
        %v434 = vunpack.c.l.b16 %v411
        %v435 = vunpack.c.l.b16 %v412
        %v436 = vunpack.c.l.b16 %v413
        %v437 = vunpack.c.l.b16 %v414
        %v438 = vunpack.c.l.b16 %v415
        %v439 = vunpack.c.l.b16 %v416
        %v440 = vpack.c.b16 %v433, %v432
        %v441 = vpack.c.b16 %v435, %v434
        %v442 = vpack.c.b16 %v437, %v436
        %v443 = vpack.c.b16 %v439, %v438
        %vm448 = vcmask 523264
        %v450 = vsel %vm448, %v408, 0
        %452 = vmatprep.subr.bf16.mxu0 0
        %453 = vmatpush1.bf16.msra.mxu0 0
        %454 = vmatprep.subr.bf16.mxu0 0
        %455 = vmatpush1.bf16.msra.mxu0 0
        %456 = vmatprep.subr.bf16.mxu0 0
        %457 = vmatpush1.bf16.msra.mxu0 0
        %458 = vmatprep.subr.bf16.mxu0 0
        %459 = vmatpush1.bf16.msra.mxu0 0
        %460 = vmatprep.subr.bf16.mxu0 0
        %461 = vmatpush1.bf16.msra.mxu0 %v443
        %462 = vmatprep.subr.bf16.mxu0 0
        %463 = vmatpush1.bf16.msra.mxu0 %v442
        %464 = vmatprep.subr.bf16.mxu0 0
        %465 = vmatpush1.bf16.msra.mxu0 %v441
        %466 = vmatprep.subr.bf16.mxu0 0
        %467 = vmatpush1.bf16.msra.mxu0 %v440
        %468 = vmatprep.subr.bf16.mxu0 0
        %469 = vmatpush2.bf16.msra.mxu0 0
        %470 = vmatprep.subr.bf16.mxu0 0
        %471 = vmatpush2.bf16.msra.mxu0 0
        %472 = vmatprep.subr.bf16.mxu0 0
        %473 = vmatpush2.bf16.msra.mxu0 0
        %474 = vmatprep.subr.bf16.mxu0 0
        %475 = vmatpush2.bf16.msra.mxu0 0
        %476 = vmatprep.subr.bf16.mxu0 0
        %477 = vmatpush2.bf16.msra.mxu0 0
        %478 = vmatprep.subr.bf16.mxu0 0
        %479 = vmatpush2.bf16.msra.mxu0 0
        %480 = vmatprep.subr.bf16.mxu0 0
        %481 = vmatpush2.bf16.msra.mxu0 0
        %482 = vmatprep.subr.bf16.mxu0 0
        %483 = vmatpush2.bf16.msra.mxu0 0
        %484 = vmatprep.mubr.bf16.mxu0 0
        %485 = vmatmul.mubr.bf16.gmra.mxu0 %v450
        %v486 = vpop.f32.mrf.mxu0
        %v487 = vadd.f32 %v422, %v486
        %v488 = vpop.f32.mrf.mxu0
        %v489 = vpop.f32.mrf.mxu0
        %v490 = vpop.f32.mrf.mxu0
        %491 = vdwg.mxu0
        %v492 = vmax.f32 %v487, 0.0
        %v493 = vpack.c.bf16 %v492, %v492
        %v494 = vld [vmem:[#allocation8] sm:$0xf]
        %v495 = vld [vmem:[#allocation8 + $0x4] sm:$0xf]
        %v496 = vld [vmem:[#allocation8 + $0x8] sm:$0xf]
        %v497 = vld [vmem:[#allocation8 + $0xc] sm:$0xf]
        %v498 = vld [vmem:[#allocation8 + $0x10] sm:$0xf]
        %v499 = vld [vmem:[#allocation8 + $0x14] sm:$0xf]
        %v500 = vld [vmem:[#allocation8 + $0x18] sm:$0xf]
        %v501 = vld [vmem:[#allocation8 + $0x1c] sm:$0xf]
        %v502 = vld [vmem:[#allocation8 + $0x20] sm:$0xf]
        %v503 = vld [vmem:[#allocation8 + $0x24] sm:$0xf]
        %v504 = vld [vmem:[#allocation8 + $0x28] sm:$0xf]
        %v505 = vld [vmem:[#allocation8 + $0x2c] sm:$0xf]
        %v506 = vld [vmem:[#allocation8 + $0x30] sm:$0xf]
        %v507 = vld [vmem:[#allocation8 + $0x34] sm:$0xf]
        %v508 = vld [vmem:[#allocation8 + $0x38] sm:$0xf]
        %v509 = vld [vmem:[#allocation8 + $0x3c] sm:$0xf]
        %v510 = vld [vmem:[%s6] sm:$0x1]
        %v512 = vlaneseq
        %v513 = vshrl.u32 %v512, 7
        %v514 = vsub.s32 0, %v513
        %v515 = vrot.slane %v510, %v514
        %v533 = vunpack.c.l.b16 %v494
        %v534 = vunpack.c.l.b16 %v495
        %v535 = vunpack.c.l.b16 %v496
        %v536 = vunpack.c.l.b16 %v497
        %v537 = vunpack.c.l.b16 %v498
        %v538 = vunpack.c.l.b16 %v499
        %v539 = vunpack.c.l.b16 %v500
        %v540 = vunpack.c.l.b16 %v501
        %v541 = vunpack.c.l.b16 %v502
        %v542 = vunpack.c.l.b16 %v503
        %v543 = vunpack.c.l.b16 %v504
        %v544 = vunpack.c.l.b16 %v505
        %v545 = vunpack.c.l.b16 %v506
        %v546 = vunpack.c.l.b16 %v507
        %v547 = vunpack.c.l.b16 %v508
        %v548 = vunpack.c.l.b16 %v509
        %v549 = vpack.c.b16 %v534, %v533
        %v550 = vpack.c.b16 %v536, %v535
        %v551 = vpack.c.b16 %v538, %v537
        %v552 = vpack.c.b16 %v540, %v539
        %v553 = vpack.c.b16 %v542, %v541
        %v554 = vpack.c.b16 %v544, %v543
        %v555 = vpack.c.b16 %v546, %v545
        %v556 = vpack.c.b16 %v548, %v547
        %565 = vmatprep.subr.bf16.mxu0 0
        %566 = vmatpush1.bf16.msra.mxu0 %v556
        %567 = vmatprep.subr.bf16.mxu0 0
        %568 = vmatpush1.bf16.msra.mxu0 %v555
        %569 = vmatprep.subr.bf16.mxu0 0
        %570 = vmatpush1.bf16.msra.mxu0 %v554
        %571 = vmatprep.subr.bf16.mxu0 0
        %572 = vmatpush1.bf16.msra.mxu0 %v553
        %573 = vmatprep.subr.bf16.mxu0 0
        %574 = vmatpush1.bf16.msra.mxu0 %v552
        %575 = vmatprep.subr.bf16.mxu0 0
        %576 = vmatpush1.bf16.msra.mxu0 %v551
        %577 = vmatprep.subr.bf16.mxu0 0
        %578 = vmatpush1.bf16.msra.mxu0 %v550
        %579 = vmatprep.subr.bf16.mxu0 0
        %580 = vmatpush1.bf16.msra.mxu0 %v549
        %581 = vmatprep.subr.bf16.mxu0 0
        %582 = vmatpush2.bf16.msra.mxu0 0
        %583 = vmatprep.subr.bf16.mxu0 0
        %584 = vmatpush2.bf16.msra.mxu0 0
        %585 = vmatprep.subr.bf16.mxu0 0
        %586 = vmatpush2.bf16.msra.mxu0 0
        %587 = vmatprep.subr.bf16.mxu0 0
        %588 = vmatpush2.bf16.msra.mxu0 0
        %589 = vmatprep.subr.bf16.mxu0 0
        %590 = vmatpush2.bf16.msra.mxu0 0
        %591 = vmatprep.subr.bf16.mxu0 0
        %592 = vmatpush2.bf16.msra.mxu0 0
        %593 = vmatprep.subr.bf16.mxu0 0
        %594 = vmatpush2.bf16.msra.mxu0 0
        %595 = vmatprep.subr.bf16.mxu0 0
        %596 = vmatpush2.bf16.msra.mxu0 0
        %597 = vmatprep.mubr.bf16.mxu0 0
        %598 = vmatmul.mubr.bf16.gmra.mxu0 %v493
        %v599 = vpop.f32.mrf.mxu0
        %v600 = vadd.f32 %v515, %v599
        %v601 = vpop.f32.mrf.mxu0
        %v602 = vpop.f32.mrf.mxu0
        %v603 = vpop.f32.mrf.mxu0
        %604 = vdwg.mxu0
        %605 = vst [vmem:[%s337] sm:$0xff] %v600
        %s606 = sand.u32 %s186, 1
        %s607 = scalar_lea.sflag [#allocation4], %s606
        %s608 = sand.u32 %s186, 1
        %s609 = smul.addr %s608, 8
        %s610 = scalar_lea.vmem [#allocation10], %s609
        // Predicated region
        $region65: #{tpu_custom_call.1} parent=47 // pred_check
          %p611 = pneg %p196
        $region66: #{tpu_custom_call.1} parent=47 // pred_check_branch
          %613 = sbr.rel (%p611) target = $region68
        $region67: #{tpu_custom_call.1} parent=47 // pred_region
          %s615 = ssub.s32 128, 128
          %616 = vsyncadd %s607, %s615
          %s617 = smul.addr %s26, 128
          %s618 = scalar_lea.hbm %s7, %s617
          %s620 = sshll.u32 %s610, 4
          %s621 = int_to_ptr.vmem [resolvable:$true] %s620
          %623 = dma.vmem_to_hbm [thread:$0]  %s621, 128, %s618, %s607
        $region68: #{tpu_custom_call.1} parent=47 // pred_fallthru
          _
      $region48: #{tpu_custom_call.1} parent=5 // pred_fallthru
        _
      %p624 = scmp.le.s32.totalorder 2, %s21
      // Predicated region
      $region69: #{tpu_custom_call.1} parent=5 // pred_check
        %p625 = pneg %p624
      $region70: #{tpu_custom_call.1} parent=5 // pred_check_branch
        %627 = sbr.rel (%p625) target = $region72
      $region71: #{tpu_custom_call.1} parent=5 // pred_region
        %s628 = ssub.s32 %s21, 2
        // Predicated region
        $region73: #{tpu_custom_call.1} parent=71 // pred_check
          %p629 = pneg %p202
        $region74: #{tpu_custom_call.1} parent=71 // pred_check_branch
          %631 = sbr.rel (%p629) target = $region76
        $region75: #{tpu_custom_call.1} parent=71 // pred_region
          %s632 = sand.u32 %s187, 1
          %s633 = scalar_lea.sflag [#allocation4], %s632
          %s634 = sand.u32 %s187, 1
          %s635 = smul.addr %s634, 8
          %s636 = scalar_lea.vmem [#allocation10], %s635
          %637 = dma.done %s633, 128
        $region76: #{tpu_custom_call.1} parent=71 // pred_fallthru
          _
      $region72: #{tpu_custom_call.1} parent=5 // pred_fallthru
        _
    $region6: #{tpu_custom_call.1} parent=1 // loop_footer
      %s25 = sadd.s32 1, %s21
    $region7: #{tpu_custom_call.1} parent=1 // loop_footer_branch
      %20 = sbr.rel target = $region3
    $region8: #{tpu_custom_call.1} parent=1 // loop_exit
      _
    %638 = vsyncpa [#allocation3], 1
    %s639 = scalar_lea.sflag [#allocation3], 1
    %640 = vsyncpa %s639, 1
    %641 = vsyncpa [#allocation6], 1
    %642 = vsyncpa [#allocation9], 1
    %643 = vsyncpa [#allocation4], 1
    %s644 = scalar_lea.sflag [#allocation4], 1
    %645 = vsyncpa %s644, 1

</llo_original>
